<compile_context>
chip_gen: v6e
topology: v6e:2x2x1
jax: 0.10.0
libtpu: 0.0.40
codegen_flags: <defaults>
</compile_context>

<pallas_src>
import functools

import jax
import jax.numpy as jnp
from jax.experimental import pallas as pl
from jax.experimental.pallas import tpu as pltpu


def _round_up(x, m):
    return ((x + m - 1) // m) * m


def dop_mixer_kernel(states_ref, qse_ref, w_ref, b_ref, out_ref, *, ae):
    """One batch tile of the DOP mixer forward.

    states_ref : (tB, S)      MXU dtype (bf16 by default), streamed
    qse_ref    : (tB, A*E)    f32, agent_qs replicated E times per agent
    w_ref      : (S, 2*A*E)   fused [W1 | Wf Wf ... Wf], MXU dtype, resident
    b_ref      : (1, 2*A*E)   fused bias, f32, resident
    out_ref    : (tB, 1)      f32
    """
    # Single fused hyper-net matmul on the MXU, f32 accumulate.
    h = jnp.dot(states_ref[...], w_ref[...],
                preferred_element_type=jnp.float32) + b_ref[...]
    h = jnp.abs(h)                                           # (tB, 2*A*E) f32

    # p[b, a*E+e] = w1[b, a, e] * w_final[b, e]; both slices 128-lane aligned.
    p = h[:, :ae] * h[:, ae:2 * ae]                          # (tB, A*E)

    # Agent contraction via lane reductions (XLU) instead of a selector matmul:
    #   den[b] = sum_{a,e} p[b, a*E+e]            = sum_a k_un[b, a]
    #   num[b] = sum_{a,e} qs[b, a] * p[b, a*E+e] = sum_a qs[b, a] * k_un[b, a]
    num = jnp.sum(p * qse_ref[...], axis=1, keepdims=True)   # (tB, 1)
    den = jnp.sum(p, axis=1, keepdims=True)                  # (tB, 1)

    # q_tot = num / den.  EUP approx reciprocal + one Newton step ~= exact
    # divide; the clamp keeps degenerate / zero-padded rows NaN-free.
    den_c = jnp.maximum(den, jnp.float32(1e-30))
    inv = pl.reciprocal(den_c, approx=True)
    inv = inv * (2.0 - den_c * inv)
    out_ref[...] = num * inv


def prepare_dop_mixer_params(params, *, n_agents, embed_dim,
                             mxu_dtype=jnp.bfloat16):
    """Fuse hyper-net weights ONCE at parameter-load time (hoisted out of the
    per-call path).  Columns [0, A*E) are hyper_w_1; columns [A*E, 2*A*E) are
    hyper_w_final replicated once per agent."""
    A, E = n_agents, embed_dim
    AE = A * E
    W1 = params["w1_w"]                                  # (S, A*E)
    Wf = params["wf_w"]                                  # (S, E)
    b1 = params["w1_b"].reshape(1, AE)
    bf = params["wf_b"].reshape(1, E)
    W_fused = jnp.concatenate([W1] + [Wf] * A, axis=1).astype(mxu_dtype)
    b_fused = jnp.concatenate([b1] + [bf] * A, axis=1).astype(jnp.float32)
    return {"W_fused": W_fused, "b_fused": b_fused,
            "n_agents": A, "embed_dim": E}


def dop_mixer_forward(agent_qs, states, prepared, *, block_b=None):
    bs, T, A = agent_qs.shape
    S = states.shape[-1]
    E = prepared["embed_dim"]
    assert prepared["n_agents"] == A
    AE = A * E
    B = bs * T
    mxu_dtype = prepared["W_fused"].dtype

    states2 = states.reshape(B, S).astype(mxu_dtype)
    # Expand agent_qs (B, A) -> (B, A*E): qse[b, a*E + e] = qs[b, a].
    qs2 = agent_qs.reshape(B, A).astype(jnp.float32)
    qse = jnp.broadcast_to(qs2[:, :, None], (B, A, E)).reshape(B, AE)

    # Batch tile: amortize the ~0.35us/step pipeline overhead without padding
    # tiny batches; keep >=2 steps when the batch allows so the "parallel"
    # grid axis can shard across v7x's two TensorCores.  Capping at 2048 rows
    # keeps the per-step VMEM working set ~7 MiB (< v5e's 16 MiB scoped VMEM
    # default, well under v7x's 32 MiB), so no vmem_limit override is needed.
    if block_b is None:
        if B < 32:
            n_target = 1
        else:
            n_target = max(2, pl.cdiv(B, 2048))
        block_b = min(2048, _round_up(pl.cdiv(B, n_target), 16))
    block_b = max(16, _round_up(block_b, 16))   # bf16 sublane packing

    nblk = pl.cdiv(B, block_b)
    Bp = nblk * block_b
    if Bp != B:
        states2 = jnp.pad(states2, ((0, Bp - B), (0, 0)))
        qse = jnp.pad(qse, ((0, Bp - B), (0, 0)))

    kernel = functools.partial(dop_mixer_kernel, ae=AE)

    out = pl.pallas_call(
        kernel,
        out_shape=jax.ShapeDtypeStruct((Bp, 1), jnp.float32),
        grid_spec=pltpu.PrefetchScalarGridSpec(
            num_scalar_prefetch=0,
            grid=(nblk,),
            in_specs=[
                pl.BlockSpec((block_b, S), lambda i: (i, 0)),    # states  (streamed)
                pl.BlockSpec((block_b, AE), lambda i: (i, 0)),   # expanded qs (streamed)
                pl.BlockSpec((S, 2 * AE), lambda i: (0, 0)),     # fused weight (resident)
                pl.BlockSpec((1, 2 * AE), lambda i: (0, 0)),     # fused bias (resident)
            ],
            out_specs=pl.BlockSpec((block_b, 1), lambda i: (i, 0)),
        ),
        compiler_params=pltpu.CompilerParams(
            dimension_semantics=("parallel",)),
    )(states2, qse, prepared["W_fused"], prepared["b_fused"])

    return out[:B].reshape(bs, T, 1)


def ref_forward(agent_qs, states, params, *, embed_dim):
    # Pure-JAX mirror of the PyTorch forward (for correctness check).
    bs, T, A = agent_qs.shape
    S = states.shape[-1]
    st = states.reshape(-1, S)
    qs = agent_qs.reshape(-1, 1, A)
    w1 = jnp.abs(st @ params["w1_w"] + params["w1_b"]).reshape(-1, A, embed_dim)
    wf = jnp.abs(st @ params["wf_w"] + params["wf_b"]).reshape(-1, embed_dim, 1)
    k = jnp.matmul(w1, wf)                                   # (B, A, 1)
    k = k / jnp.sum(k, axis=1, keepdims=True)
    y = jnp.matmul(qs, k)                                    # (B, 1, 1)
    return y.reshape(bs, -1, 1)


if __name__ == "__main__":
    # Small shapes consistent with the module.
    bs, T = 2, 8          # agent_qs arrives as (bs, T, n_agents)
    n_agents = 4
    state_dim = 32        # = prod(args.state_shape)
    embed_dim = 32        # args.mixing_embed_dim  (n_agents*embed_dim = 128)

    key = jax.random.PRNGKey(0)
    k_s, k_q, k_w1, k_b1, k_wf, k_bf, k_s2, k_q2 = jax.random.split(key, 8)

    states = jax.random.normal(k_s, (bs, T, state_dim), jnp.float32)
    agent_qs = jax.random.normal(k_q, (bs, T, n_agents), jnp.float32)

    # Deterministic synthetic parameters (weights pre-transposed to (in, out)).
    params = {
        "w1_w": 0.1 * jax.random.normal(k_w1, (state_dim, n_agents * embed_dim),
                                        jnp.float32),
        "w1_b": 0.1 * jax.random.normal(k_b1, (n_agents * embed_dim,), jnp.float32),
        "wf_w": 0.1 * jax.random.normal(k_wf, (state_dim, embed_dim), jnp.float32),
        "wf_b": 0.1 * jax.random.normal(k_bf, (embed_dim,), jnp.float32),
        # hyper_b_1 and V exist in __init__ but never affect forward()'s output.
    }

    q_ref = ref_forward(agent_qs, states, params, embed_dim=embed_dim)

    # Fused weights prepared once (hoisted out of the per-call path).
    prep_bf16 = prepare_dop_mixer_params(params, n_agents=n_agents,
                                         embed_dim=embed_dim,
                                         mxu_dtype=jnp.bfloat16)
    prep_f32 = prepare_dop_mixer_params(params, n_agents=n_agents,
                                        embed_dim=embed_dim,
                                        mxu_dtype=jnp.float32)

    # 1) Default path: bf16 MXU operands, auto block_b (B=16 -> 16, no padding).
    q1 = jax.block_until_ready(dop_mixer_forward(agent_qs, states, prep_bf16))
    assert q1.shape == (bs, T, 1)
    assert bool(jnp.all(jnp.isfinite(q1))), "non-finite output"
    assert jnp.allclose(q1, q_ref, atol=5e-2, rtol=5e-2), "bf16 mismatch"

    # 2) f32 MXU operands, same inputs — tight tolerance.
    q2 = jax.block_until_ready(dop_mixer_forward(agent_qs, states, prep_f32))
    assert jnp.allclose(q2, q_ref, atol=1e-3, rtol=1e-3), "f32 mismatch"

    # 3) Multi-step grid + tail padding (B=80, block_b=32 -> 3 steps, pad 16).
    states_l = jax.random.normal(k_s2, (2, 40, state_dim), jnp.float32)
    qs_l = jax.random.normal(k_q2, (2, 40, n_agents), jnp.float32)
    q3 = jax.block_until_ready(
        dop_mixer_forward(qs_l, states_l, prep_f32, block_b=32))
    q3_ref = ref_forward(qs_l, states_l, params, embed_dim=embed_dim)
    assert q3.shape == (2, 40, 1)
    assert jnp.allclose(q3, q3_ref, atol=1e-3, rtol=1e-3), "multi-step mismatch"

    print("KERNEL_OK")
</pallas_src>

<mosaic_0001>
module attributes {stable_mosaic.version = 11 : i64} {
  func.func @dop_mixer_kernel(%arg0: i32, %arg1: memref<16x32xbf16, #tpu.memory_space<vmem>>, %arg2: memref<16x128xf32, #tpu.memory_space<vmem>>, %arg3: memref<32x256xbf16, #tpu.memory_space<vmem>>, %arg4: memref<1x256xf32, #tpu.memory_space<vmem>>, %arg5: memref<16x1xf32, #tpu.memory_space<vmem>>) attributes {dimension_semantics = [#tpu.dimension_semantics<parallel>], iteration_bounds = array<i64: 1>, scalar_prefetch = 0 : i64, scratch_operands = 0 : i64, tpu.core_type = #tpu.core_type<tc>, window_params = [{transform_indices = @transform_0, window_bounds = array<i64: 16, 32>}, {transform_indices = @transform_1, window_bounds = array<i64: 16, 128>}, {pipeline_mode = #tpu.pipeline_mode<synchronous>, transform_indices = @transform_2, window_bounds = array<i64: 32, 256>}, {pipeline_mode = #tpu.pipeline_mode<synchronous>, transform_indices = @transform_3, window_bounds = array<i64: 1, 256>}, {transform_indices = @transform_4, window_bounds = array<i64: 16, 1>}]} {
    %c0 = arith.constant 0 : index
    %c0_0 = arith.constant 0 : index
    %0 = vector.load %arg1[%c0, %c0_0] : memref<16x32xbf16, #tpu.memory_space<vmem>>, vector<16x32xbf16>
    %c0_1 = arith.constant 0 : index
    %c0_2 = arith.constant 0 : index
    %1 = vector.load %arg3[%c0_1, %c0_2] : memref<32x256xbf16, #tpu.memory_space<vmem>>, vector<32x256xbf16>
    %cst = arith.constant dense<0.000000e+00> : vector<16x256xf32>
    %2 = tpu.matmul %0, %1, %cst {dimension_numbers = #tpu.dot_dimension_numbers<[1], [0], [0], [1], [0, 0, 1, 1], [], []>} : vector<16x32xbf16>, vector<32x256xbf16>, vector<16x256xf32> -> vector<16x256xf32>
    %c0_3 = arith.constant 0 : index
    %c0_4 = arith.constant 0 : index
    %3 = vector.load %arg4[%c0_3, %c0_4] : memref<1x256xf32, #tpu.memory_space<vmem>>, vector<1x256xf32>
    %4 = vector.broadcast %3 : vector<1x256xf32> to vector<16x256xf32>
    %5 = arith.addf %2, %4 : vector<16x256xf32>
    %6 = math.absf %5 : vector<16x256xf32>
    %7 = vector.extract_strided_slice %6 {offsets = [0, 0], sizes = [16, 128], strides = [1, 1]} : vector<16x256xf32> to vector<16x128xf32>
    %8 = vector.extract_strided_slice %6 {offsets = [0, 128], sizes = [16, 128], strides = [1, 1]} : vector<16x256xf32> to vector<16x128xf32>
    %9 = arith.mulf %7, %8 : vector<16x128xf32>
    %c0_5 = arith.constant 0 : index
    %c0_6 = arith.constant 0 : index
    %10 = vector.load %arg2[%c0_5, %c0_6] : memref<16x128xf32, #tpu.memory_space<vmem>>, vector<16x128xf32>
    %11 = arith.mulf %9, %10 : vector<16x128xf32>
    %cst_7 = arith.constant dense<0.000000e+00> : vector<16xf32>
    %12 = vector.multi_reduction <add>, %11, %cst_7 [1] : vector<16x128xf32> to vector<16xf32>
    %13 = vector.shape_cast %12 : vector<16xf32> to vector<16x1xf32>
    %cst_8 = arith.constant dense<0.000000e+00> : vector<16xf32>
    %14 = vector.multi_reduction <add>, %9, %cst_8 [1] : vector<16x128xf32> to vector<16xf32>
    %15 = vector.shape_cast %14 : vector<16xf32> to vector<16x1xf32>
    %cst_9 = arith.constant 1.000000e-30 : f32
    %16 = vector.broadcast %cst_9 : f32 to vector<16x1xf32>
    %17 = arith.maximumf %15, %16 : vector<16x1xf32>
    %18 = tpu.reciprocal %17 {approx = true} : vector<16x1xf32> -> vector<16x1xf32>
    %19 = arith.mulf %17, %18 : vector<16x1xf32>
    %cst_10 = arith.constant 2.000000e+00 : f32
    %20 = vector.broadcast %cst_10 : f32 to vector<16x1xf32>
    %21 = arith.subf %20, %19 : vector<16x1xf32>
    %22 = arith.mulf %18, %21 : vector<16x1xf32>
    %23 = arith.mulf %13, %22 : vector<16x1xf32>
    %c0_11 = arith.constant 0 : index
    %c0_12 = arith.constant 0 : index
    %24 = vector.load %arg5[%c0_11, %c0_12] : memref<16x1xf32, #tpu.memory_space<vmem>>, vector<16x1xf32>
    tpu.vector_store %arg5[%c0_11, %c0_12], %23 {strides = array<i32>} : memref<16x1xf32, #tpu.memory_space<vmem>>, vector<16x1xf32>,
    return
  }
  func.func @transform_0(%arg0: i32) -> (i32, i32) {
    %c0_i32 = arith.constant 0 : i32
    %c0_i32_0 = arith.constant 0 : i32
    return %arg0, %c0_i32 : i32, i32
  }
  func.func @transform_1(%arg0: i32) -> (i32, i32) {
    %c0_i32 = arith.constant 0 : i32
    %c0_i32_0 = arith.constant 0 : i32
    return %arg0, %c0_i32 : i32, i32
  }
  func.func @transform_2(%arg0: i32) -> (i32, i32) {
    %c0_i32 = arith.constant 0 : i32
    %c0_i32_0 = arith.constant 0 : i32
    %c0_i32_1 = arith.constant 0 : i32
    return %c0_i32, %c0_i32_0 : i32, i32
  }
  func.func @transform_3(%arg0: i32) -> (i32, i32) {
    %c0_i32 = arith.constant 0 : i32
    %c0_i32_0 = arith.constant 0 : i32
    %c0_i32_1 = arith.constant 0 : i32
    return %c0_i32, %c0_i32_0 : i32, i32
  }
  func.func @transform_4(%arg0: i32) -> (i32, i32) {
    %c0_i32 = arith.constant 0 : i32
    %c0_i32_0 = arith.constant 0 : i32
    return %arg0, %c0_i32 : i32, i32
  }
}

</mosaic_0001>

<llo_original>
// kernel: tpu_custom_call.1
$region0: #{tpu_custom_call.1}
  #allocation0 [shape = 'u32[]', space=smem, size = 0x4, offset = 0x4, fixed_abs, tag = 'smem constant byte address 0x4 - core index']
  #allocation1 [shape = 'u32[144,128]{1,0:T(1,128)}', space=vmem, size = 0x12000, scoped, tag = 'internal scratch']
  %s0 = inlined_call_operand.hbm [shape: bf16[16,32], index: 0, kind: input, shape index: {}]
  %s1 = inlined_call_operand.hbm [shape: f32[16,128], index: 1, kind: input, shape index: {}]
  %s2 = inlined_call_operand.hbm [shape: bf16[32,256], index: 2, kind: input, shape index: {}]
  %s3 = inlined_call_operand.vmem [shape: f32[1,256], index: 3, kind: input, shape index: {}]
  %s4 = inlined_call_operand.vmem [shape: f32[16,1], index: 4, kind: output, shape index: {}]
  %s5 = sld [smem:[#allocation0]]
  $region38: #{tpu_custom_call.1} parent=0
    _
  %s7 = ssub.s32 1, %s5
  %s8 = scalar_select 0, %s7, %s5
  $region1: #{tpu_custom_call.1} parent=0
    #allocation2 [shape = 'u8[4096]{0}', space=vmem, size = 0x1000, scoped, tag = 'input window, operand 0, single buffered']
    #allocation3 [shape = 's32[1]{0}', space=sflag, size = 0x4, scoped, tag = 'scoped memory for tpu_custom_call.1']
    #allocation4 [shape = 'u8[8192]{0}', space=vmem, size = 0x2000, scoped, tag = 'input window, operand 1, single buffered']
    #allocation5 [shape = 's32[1]{0}', space=sflag, size = 0x4, scoped, tag = 'scoped memory for tpu_custom_call.1']
    #allocation6 [shape = 'u8[16384]{0}', space=vmem, size = 0x4000, scoped, tag = 'input window, operand 2, single buffered']
    %9 = vsyncpa [#allocation3], 0
    %10 = vsyncpa [#allocation5], 0
    // Predicated region
    $region2: #{tpu_custom_call.1} parent=1 // pred_check
      _
    $region3: #{tpu_custom_call.1} parent=1 // pred_check_branch
      %12 = sbr.rel (0) target = $region5
    $region4: #{tpu_custom_call.1} parent=1 // pred_region
      %s14 = ssub.s32 128, 128
      %15 = vsyncadd [#allocation3], %s14
      %s16 = sshll.u32 [#allocation2], 4
      %s17 = int_to_ptr.vmem [resolvable:$true] %s16
      %22 = dma.hbm_to_vmem [thread:$0]  %s0, 128, %s17, [#allocation3], 64, 64, 4
    $region5: #{tpu_custom_call.1} parent=1 // pred_fallthru
      _
    // Predicated region
    $region6: #{tpu_custom_call.1} parent=1 // pred_check
      _
    $region7: #{tpu_custom_call.1} parent=1 // pred_check_branch
      %24 = sbr.rel (0) target = $region9
    $region8: #{tpu_custom_call.1} parent=1 // pred_region
      %s26 = ssub.s32 256, 256
      %27 = vsyncadd [#allocation5], %s26
      %s28 = sshll.u32 [#allocation4], 4
      %s29 = int_to_ptr.vmem [resolvable:$true] %s28
      %34 = dma.hbm_to_vmem [thread:$0]  %s1, 256, %s29, [#allocation5], 128, 128, 8
    $region9: #{tpu_custom_call.1} parent=1 // pred_fallthru
      _
    // Predicated region
    $region10: #{tpu_custom_call.1} parent=1 // pred_check
      _
    $region11: #{tpu_custom_call.1} parent=1 // pred_check_branch
      %36 = sbr.rel (0) target = $region13
    $region12: #{tpu_custom_call.1} parent=1 // pred_region
      %s38 = ssub.s32 512, 512
      %39 = vsyncadd [#allocation5], %s38
      %s40 = sshll.u32 [#allocation6], 4
      %s41 = int_to_ptr.vmem [resolvable:$true] %s40
      %46 = dma.hbm_to_vmem [thread:$0]  %s2, 512, %s41, [#allocation5], 128, 128, 8
    $region13: #{tpu_custom_call.1} parent=1 // pred_fallthru
      _
    // Predicated region
    $region14: #{tpu_custom_call.1} parent=1 // pred_check
      _
    $region15: #{tpu_custom_call.1} parent=1 // pred_check_branch
      %48 = sbr.rel (0) target = $region17
    $region16: #{tpu_custom_call.1} parent=1 // pred_region
      _
    $region17: #{tpu_custom_call.1} parent=1 // pred_fallthru
      _
    // Predicated region
    $region18: #{tpu_custom_call.1} parent=1 // pred_check
      _
    $region19: #{tpu_custom_call.1} parent=1 // pred_check_branch
      %50 = sbr.rel (0) target = $region21
    $region20: #{tpu_custom_call.1} parent=1 // pred_region
      %51 = dma.done [#allocation3], 128
    $region21: #{tpu_custom_call.1} parent=1 // pred_fallthru
      _
    // Predicated region
    $region22: #{tpu_custom_call.1} parent=1 // pred_check
      _
    $region23: #{tpu_custom_call.1} parent=1 // pred_check_branch
      %53 = sbr.rel (0) target = $region25
    $region24: #{tpu_custom_call.1} parent=1 // pred_region
      %54 = dma.done [#allocation5], 256
    $region25: #{tpu_custom_call.1} parent=1 // pred_fallthru
      _
    // Predicated region
    $region26: #{tpu_custom_call.1} parent=1 // pred_check
      _
    $region27: #{tpu_custom_call.1} parent=1 // pred_check_branch
      %56 = sbr.rel (0) target = $region29
    $region28: #{tpu_custom_call.1} parent=1 // pred_region
      %57 = dma.done [#allocation5], 512
    $region29: #{tpu_custom_call.1} parent=1 // pred_fallthru
      _
    %v59 = vld [vmem:[#allocation2] sm:$0xf]
    %v60 = vld [vmem:[#allocation2 + $0x4] sm:$0xf]
    %v61 = vld [vmem:[#allocation6] sm:$0xff]
    %v62 = vld [vmem:[#allocation6 + $0x8] sm:$0xff]
    %v63 = vld [vmem:[#allocation6 + $0x10] sm:$0xff]
    %v64 = vld [vmem:[#allocation6 + $0x18] sm:$0xff]
    %v65 = vld [vmem:[%s3] sm:$0x3]
    %v67 = vlaneseq
    %v68 = vshrl.u32 %v67, 7
    %v69 = vsub.s32 0, %v68
    %v70 = vrot.slane %v65, %v69
    %v71 = vlaneseq
    %v72 = vshrl.u32 %v71, 7
    %v73 = vsub.s32 1, %v72
    %v74 = vrot.slane %v65, %v73
    %v79 = vunpack.c.l.b16 %v59
    %v80 = vunpack.c.l.b16 %v60
    %v81 = vpack.c.b16 %v80, %v79
    %v86 = vunpack.c.l.b16 %v61
    %v87 = vunpack.c.h.b16 %v61
    %v88 = vunpack.c.l.b16 %v62
    %v89 = vunpack.c.h.b16 %v62
    %v90 = vunpack.c.l.b16 %v63
    %v91 = vunpack.c.h.b16 %v63
    %v92 = vunpack.c.l.b16 %v64
    %v93 = vunpack.c.h.b16 %v64
    %v94 = vpack.c.b16 %v88, %v86
    %v95 = vpack.c.b16 %v89, %v87
    %v96 = vpack.c.b16 %v92, %v90
    %v97 = vpack.c.b16 %v93, %v91
    %vm102 = vcmask 261120
    %v104 = vsel %vm102, %v81, 0
    %106 = vmatprep.subr.bf16.mxu0 0
    %107 = vmatpush1.bf16.msra.mxu0 0
    %108 = vmatprep.subr.bf16.mxu0 0
    %109 = vmatpush1.bf16.msra.mxu0 0
    %110 = vmatprep.subr.bf16.mxu0 0
    %111 = vmatpush1.bf16.msra.mxu0 0
    %112 = vmatprep.subr.bf16.mxu0 0
    %113 = vmatpush1.bf16.msra.mxu0 0
    %114 = vmatprep.subr.bf16.mxu0 0
    %115 = vmatpush1.bf16.msra.mxu0 0
    %116 = vmatprep.subr.bf16.mxu0 0
    %117 = vmatpush1.bf16.msra.mxu0 0
    %118 = vmatprep.subr.bf16.mxu0 %v97
    %119 = vmatpush1.bf16.msra.mxu0 %v96
    %120 = vmatprep.subr.bf16.mxu0 %v95
    %121 = vmatpush1.bf16.msra.mxu0 %v94
    %122 = vmatprep.subr.bf16.mxu0 0
    %123 = vmatpush2.bf16.msra.mxu0 0
    %124 = vmatprep.subr.bf16.mxu0 0
    %125 = vmatpush2.bf16.msra.mxu0 0
    %126 = vmatprep.subr.bf16.mxu0 0
    %127 = vmatpush2.bf16.msra.mxu0 0
    %128 = vmatprep.subr.bf16.mxu0 0
    %129 = vmatpush2.bf16.msra.mxu0 0
    %130 = vmatprep.subr.bf16.mxu0 0
    %131 = vmatpush2.bf16.msra.mxu0 0
    %132 = vmatprep.subr.bf16.mxu0 0
    %133 = vmatpush2.bf16.msra.mxu0 0
    %134 = vmatprep.subr.bf16.mxu0 0
    %135 = vmatpush2.bf16.msra.mxu0 0
    %136 = vmatprep.subr.bf16.mxu0 0
    %137 = vmatpush2.bf16.msra.mxu0 0
    %138 = vmatprep.mubr.bf16.mxu0 0
    %139 = vmatmul.mubr.bf16.gmra.mxu0 %v104
    %v140 = vpop.f32.mrf.mxu0
    %v141 = vadd.f32 %v70, %v140
    %v142 = vpop.f32.mrf.mxu0
    %v143 = vadd.f32 %v74, %v142
    %v144 = vpop.f32.mrf.mxu0
    %v145 = vadd.f32 %v70, %v144
    %v146 = vpop.f32.mrf.mxu0
    %v147 = vadd.f32 %v74, %v146
    %148 = vdwg.mxu0
    %v149 = vand.u32 2147483647, %v141
    %v150 = vand.u32 2147483647, %v143
    %v151 = vand.u32 2147483647, %v145
    %v152 = vand.u32 2147483647, %v147
    %v153 = vmul.f32 %v149, %v150
    %v154 = vmul.f32 %v151, %v152
    %v155 = vld [vmem:[#allocation4] sm:$0xff]
    %v156 = vld [vmem:[#allocation4 + $0x8] sm:$0xff]
    %v157 = vmul.f32 %v153, %v155
    %v158 = vmul.f32 %v154, %v156
    %159 = vadd.xlane.f32.xlu0 %v157
    %v160 = vpop.xlane.xlu0 %159
    %161 = vadd.xlane.f32.xlu0 %v158
    %v162 = vpop.xlane.xlu0 %161
    %163 = vadd.xlane.f32.xlu0 %v153
    %v164 = vpop.xlane.xlu0 %163
    %165 = vadd.xlane.f32.xlu0 %v154
    %v166 = vpop.xlane.xlu0 %165
    %v167 = vmax.f32 %v164, 1e-30
    %v168 = vmax.f32 %v166, 1e-30
    %v169 = vrcp.pop %v167
    %v170 = vrcp.pop %v168
    %v171 = vmul.f32 %v167, %v169
    %v172 = vmul.f32 %v168, %v170
    %v173 = vsub.f32 2.0, %v171
    %v174 = vsub.f32 2.0, %v172
    %v175 = vmul.f32 %v169, %v173
    %v176 = vmul.f32 %v170, %v174
    %v177 = vmul.f32 %v160, %v175
    %v178 = vmul.f32 %v162, %v176
    %vm179 = vcmask 7168
    %180 = vst.msk [vmem:[%s4] sm:$0xff] %vm179, %v177
    %181 = vst.msk [vmem:[%s4 + $0x8] sm:$0xff] %vm179, %v178
    // Predicated region
    $region30: #{tpu_custom_call.1} parent=1 // pred_check
      _
    $region31: #{tpu_custom_call.1} parent=1 // pred_check_branch
      %183 = sbr.rel (0) target = $region33
    $region32: #{tpu_custom_call.1} parent=1 // pred_region
      _
    $region33: #{tpu_custom_call.1} parent=1 // pred_fallthru
      _
    // Predicated region
    $region34: #{tpu_custom_call.1} parent=1 // pred_check
      _
    $region35: #{tpu_custom_call.1} parent=1 // pred_check_branch
      %185 = sbr.rel (0) target = $region37
    $region36: #{tpu_custom_call.1} parent=1 // pred_region
      _
    $region37: #{tpu_custom_call.1} parent=1 // pred_fallthru
      _
    %186 = vsyncpa [#allocation3], 1
    %187 = vsyncpa [#allocation5], 1

</llo_original>
